<compile_context>
chip_gen: v7x
topology: tpu7x:2x2x1
jax: 0.10.0
libtpu: 0.0.40
codegen_flags: <defaults>
</compile_context>

<pallas_src>
import jax
import jax.numpy as jnp
from jax import lax
from jax.experimental import pallas as pl
from jax.experimental.pallas import tpu as pltpu


_MAX_BLOCK_BYTES = 4 * 1024 * 1024      # per-block cap; 4x (in+out, 2-deep) = 16 MiB
_VMEM_LIMIT_BYTES = 32 * 1024 * 1024    # explicit raise needed on v5e; safe on v7x
_MIN_SPLIT_BYTES = 2 * 1024 * 1024      # above this, force >=2 grid steps (v7x 2 TCs)
_FLAT_COL_CANDIDATES = (4096, 2048, 1024, 512, 256, 128)


def _copy_kernel(x_ref, o_ref):
    # Pure lane-dense VMEM copy of one tile.
    o_ref[...] = x_ref[...]


def _sublane_multiple(itemsize):
    # f32 -> 8, bf16/f16 -> 16, int8/fp8 -> 32 (native packed-sublane granularity).
    return max(8, 32 // max(1, itemsize))


def _pick_tiles(rows, cols, itemsize):
    """Pick (block_rows, block_cols) under the byte budget.

    Guarantees: block_cols is a multiple of 128 or == cols; block_rows is a
    multiple of the dtype sublane packing or == rows.
    """
    sub = _sublane_multiple(itemsize)
    total_bytes = rows * cols * itemsize

    budget = _MAX_BLOCK_BYTES
    if total_bytes > _MIN_SPLIT_BYTES:
        # Keep >= 2 grid steps so v7x can shard the copy across both cores.
        budget = min(budget, max(1, (total_bytes + 1) // 2))

    min_rows = min(rows, sub)

    # Column (lane) tile: full width if a min_rows-tall block fits, else a
    # multiple of 128 within the budget.
    col_budget_elems = max(128, budget // max(1, min_rows * itemsize))
    if cols <= col_budget_elems:
        block_cols = cols
    else:
        block_cols = max(128, (col_budget_elems // 128) * 128)

    # Row (sublane) tile within the remaining byte budget.
    row_budget = max(1, budget // max(1, block_cols * itemsize))
    if row_budget >= rows:
        block_rows = rows
    else:
        block_rows = max(min_rows, (row_budget // sub) * sub)
        block_rows = min(block_rows, rows)

    return block_rows, block_cols


def _tiled_copy(x2d):
    """Lane-dense, VMEM-budgeted, dual-core-friendly identity copy."""
    rows, cols = x2d.shape
    itemsize = x2d.dtype.itemsize
    block_rows, block_cols = _pick_tiles(rows, cols, itemsize)
    grid = (pl.cdiv(rows, block_rows), pl.cdiv(cols, block_cols))

    return pl.pallas_call(
        _copy_kernel,
        out_shape=jax.ShapeDtypeStruct((rows, cols), x2d.dtype),
        grid=grid,
        in_specs=[pl.BlockSpec((block_rows, block_cols), lambda i, j: (i, j))],
        out_specs=pl.BlockSpec((block_rows, block_cols), lambda i, j: (i, j)),
        input_output_aliases={0: 0},
        compiler_params=pltpu.CompilerParams(
            dimension_semantics=("parallel", "parallel"),
            vmem_limit_bytes=_VMEM_LIMIT_BYTES,
        ),
        cost_estimate=pl.CostEstimate(
            flops=0,
            transcendentals=0,
            bytes_accessed=2 * rows * cols * itemsize,
        ),
    )(x2d)


def squeeze_channels(x):
    """Pallas implementation of SqueezeChannels.forward: x.squeeze(2)."""
    assert x.ndim == 3, "SqueezeChannels expects a 3-D tensor"
    B, C, L = x.shape
    if L != 1:
        # torch.squeeze(dim) is a no-op when that dim is not size 1.
        return x

    # Metadata-only squeeze in the wrapper -> contiguous (B, C) slab.
    # (Outside a kernel-mandated setting, returning this directly is optimal.)
    x2d = lax.squeeze(x, (2,))

    total = B * C
    flat_cols = 0
    for cand in _FLAT_COL_CANDIDATES:
        if total >= cand and total % cand == 0:
            flat_cols = cand
            break

    if flat_cols:
        # Wide, lane-dense view of the same contiguous bytes: unmasked vst
        # even when C is small or not a multiple of 128.
        flat = x2d.reshape(total // flat_cols, flat_cols)
        out = _tiled_copy(flat)
        return out.reshape(B, C)

    # Fallback: copy in the natural (B, C) layout (small / odd sizes).
    return _tiled_copy(x2d)


if __name__ == "__main__":
    key = jax.random.PRNGKey(0)

    # Canonical small shape for this module: (batch=2, channels=4, 1).
    x = jax.random.normal(key, (2, 4, 1), dtype=jnp.float32)
    y = jax.block_until_ready(squeeze_channels(x))
    ref = jnp.squeeze(x, axis=2)
    assert y.shape == (2, 4)
    assert y.dtype == x.dtype
    assert jnp.array_equal(y, ref)

    # Lane-dense flattened path (B*C multiple of 128).
    x2 = jax.random.normal(jax.random.PRNGKey(1), (16, 128, 1), dtype=jnp.float32)
    y2 = jax.block_until_ready(squeeze_channels(x2))
    assert y2.shape == (16, 128)
    assert jnp.array_equal(y2, jnp.squeeze(x2, axis=2))

    # Sub-32-bit dtype path (dtype-aware sublane multiple).
    x3 = jax.random.normal(jax.random.PRNGKey(2), (8, 32, 1), dtype=jnp.bfloat16)
    y3 = jax.block_until_ready(squeeze_channels(x3))
    assert y3.shape == (8, 32)
    assert y3.dtype == jnp.bfloat16
    assert jnp.array_equal(y3, jnp.squeeze(x3, axis=2))

    # No-op path: squeeze(2) when dim 2 is not size 1 returns x unchanged.
    x4 = jax.random.normal(jax.random.PRNGKey(3), (2, 4, 3), dtype=jnp.float32)
    y4 = squeeze_channels(x4)
    assert y4.shape == (2, 4, 3)
    assert jnp.array_equal(y4, x4)

    print("KERNEL_OK")
</pallas_src>

<mosaic_0001>
module attributes {stable_mosaic.version = 11 : i64} {
  func.func @_copy_kernel(%arg0: i32, %arg1: i32, %arg2: memref<2x4xf32, #tpu.memory_space<vmem>>, %arg3: memref<2x4xf32, #tpu.memory_space<vmem>>) attributes {dimension_semantics = [#tpu.dimension_semantics<parallel>, #tpu.dimension_semantics<parallel>], iteration_bounds = array<i64: 1, 1>, scalar_prefetch = 0 : i64, scratch_operands = 0 : i64, tpu.core_type = #tpu.core_type<tc>, window_params = [{transform_indices = @transform_0, window_bounds = array<i64: 2, 4>}, {transform_indices = @transform_1, window_bounds = array<i64: 2, 4>}]} {
    %c0 = arith.constant 0 : index
    %c0_0 = arith.constant 0 : index
    %0 = vector.load %arg2[%c0, %c0_0] : memref<2x4xf32, #tpu.memory_space<vmem>>, vector<2x4xf32>
    %c0_1 = arith.constant 0 : index
    %c0_2 = arith.constant 0 : index
    %1 = vector.load %arg3[%c0_1, %c0_2] : memref<2x4xf32, #tpu.memory_space<vmem>>, vector<2x4xf32>
    tpu.vector_store %arg3[%c0_1, %c0_2], %0 {strides = array<i32>} : memref<2x4xf32, #tpu.memory_space<vmem>>, vector<2x4xf32>,
    return
  }
  func.func @transform_0(%arg0: i32, %arg1: i32) -> (i32, i32) {
    %c0_i32 = arith.constant 0 : i32
    return %arg0, %arg1 : i32, i32
  }
  func.func @transform_1(%arg0: i32, %arg1: i32) -> (i32, i32) {
    %c0_i32 = arith.constant 0 : i32
    return %arg0, %arg1 : i32, i32
  }
}

</mosaic_0001>

<llo_original>
// kernel: tpu_custom_call.1
$region0: #{tpu_custom_call.1}
  #allocation0 [shape = 'u32[]', space=smem, size = 0x4, offset = 0x4, fixed_abs, tag = 'smem constant byte address 0x4 - core index']
  #allocation1 [shape = 'u32[144,128]{1,0:T(1,128)}', space=vmem, size = 0x12000, scoped, tag = 'internal scratch']
  %s0 = inlined_call_operand.hbm [shape: f32[2,4], index: 0, kind: input, shape index: {}, may-alias: {0,1}]
  %s1 = inlined_call_operand.hbm [shape: f32[2,4], index: 1, kind: output, shape index: {}, may-alias: {0,1}]
  %s2 = sld [smem:[#allocation0]]
  $region18: #{tpu_custom_call.1} parent=0
    _
  %s4 = ssub.s32 1, %s2
  %s5 = scalar_select 0, %s4, %s2
  $region1: #{tpu_custom_call.1} parent=0
    #allocation2 [shape = 'u8[1024]{0}', space=vmem, size = 0x400, scoped, tag = 'input window, operand 0, single buffered']
    #allocation3 [shape = 's32[1]{0}', space=sflag, size = 0x4, scoped, tag = 'scoped memory for tpu_custom_call.1']
    #allocation4 [shape = 's32[1]{0}', space=sflag, size = 0x4, scoped, tag = 'scoped memory for tpu_custom_call.1']
    #allocation5 [shape = 'u8[1024]{0}', space=vmem, size = 0x400, scoped, tag = 'output window, operand 0, single buffered']
    %6 = vsyncpa [#allocation3], 0
    %7 = vsyncpa [#allocation4], 0
    // Predicated region
    $region2: #{tpu_custom_call.1} parent=1 // pred_check
      _
    $region3: #{tpu_custom_call.1} parent=1 // pred_check_branch
      %9 = sbr.rel (0) target = $region5
    $region4: #{tpu_custom_call.1} parent=1 // pred_region
      %s11 = ssub.s32 32, 32
      %12 = vsyncadd [#allocation3], %s11
      %s14 = sshll.u32 [#allocation2], 4
      %s15 = int_to_ptr.vmem [resolvable:$true] %s14
      %17 = dma.hbm_to_vmem [thread:$0]  %s0, 32, %s15, [#allocation3]
    $region5: #{tpu_custom_call.1} parent=1 // pred_fallthru
      _
    // Predicated region
    $region6: #{tpu_custom_call.1} parent=1 // pred_check
      _
    $region7: #{tpu_custom_call.1} parent=1 // pred_check_branch
      %19 = sbr.rel (0) target = $region9
    $region8: #{tpu_custom_call.1} parent=1 // pred_region
      %20 = dma.done [#allocation3], 32
    $region9: #{tpu_custom_call.1} parent=1 // pred_fallthru
      _
    %v21 = vld [vmem:[#allocation2] sm:$0x3]
    %vm22 = vcmask 25600
    %23 = vst.msk [vmem:[#allocation5] sm:$0x3] %vm22, %v21
    // Predicated region
    $region10: #{tpu_custom_call.1} parent=1 // pred_check
      _
    $region11: #{tpu_custom_call.1} parent=1 // pred_check_branch
      %25 = sbr.rel (0) target = $region13
    $region12: #{tpu_custom_call.1} parent=1 // pred_region
      %s27 = ssub.s32 32, 32
      %28 = vsyncadd [#allocation4], %s27
      %s30 = sshll.u32 [#allocation5], 4
      %s31 = int_to_ptr.vmem [resolvable:$true] %s30
      %33 = dma.vmem_to_hbm [thread:$0]  %s31, 32, %s1, [#allocation4]
    $region13: #{tpu_custom_call.1} parent=1 // pred_fallthru
      _
    // Predicated region
    $region14: #{tpu_custom_call.1} parent=1 // pred_check
      _
    $region15: #{tpu_custom_call.1} parent=1 // pred_check_branch
      %35 = sbr.rel (0) target = $region17
    $region16: #{tpu_custom_call.1} parent=1 // pred_region
      %36 = dma.done [#allocation4], 32
    $region17: #{tpu_custom_call.1} parent=1 // pred_fallthru
      _
    %37 = vsyncpa [#allocation3], 1
    %38 = vsyncpa [#allocation4], 1

</llo_original>
